<compile_context>
chip_gen: v7x
topology: tpu7x:2x2x1
jax: 0.10.0
libtpu: 0.0.40
codegen_flags: <defaults>
</compile_context>

<pallas_src>
import jax
import jax.numpy as jnp
from jax.experimental import pallas as pl
from jax.experimental.pallas import tpu as pltpu


def _normalize_kernel(scale_ref, bias_ref, x_ref, o_ref):
    # scale_ref, bias_ref: (rows, 1) f32 VMEM — per-row (= per (n, c)) affine params.
    # x_ref, o_ref:        (rows, lane) VMEM tile of the flattened (N*C, H*W) image.
    # Compute in f32 (the upcast is free on an HBM-bound kernel); single rounding
    # on the store keeps bf16/f16 inputs close to the true (x - mean) / std.
    x = x_ref[...].astype(jnp.float32)
    o_ref[...] = (x * scale_ref[...] + bias_ref[...]).astype(o_ref.dtype)


def _round_up(x, m):
    return ((x + m - 1) // m) * m


def _pick_target_tile_bytes():
    """~2 MiB/tile is safe everywhere (v5e scoped-VMEM default is only 16 MiB).

    On v7x (3.2 TB/s HBM) the ~0.35 us per-grid-step overhead is worth ~1 MiB of
    forgone traffic, so prefer 4 MiB tiles there: double-buffered in+out is
    ~16 MiB, still under the 32 MiB scoped default of the 64 MiB physical VMEM.
    """
    try:
        info = pltpu.get_tpu_info()
        name = str(getattr(info, "chip_version", "")).lower()
        if "7" in name:  # v7x family
            return 4 << 20
    except Exception:
        pass
    return 2 << 20


def normalize(x, mean, std, *, target_tile_bytes=None, in_place=False):
    """Per-channel normalization of an NCHW tensor: (x - mean[c]) / std[c]."""
    N, C, H, W = x.shape
    dtype = x.dtype
    R, L = N * C, H * W
    itemsize = jnp.dtype(dtype).itemsize

    if target_tile_bytes is None:
        target_tile_bytes = _pick_target_tile_bytes()

    # Per-channel affine params, kept in f32 (divide hoisted out of the kernel):
    #   y = x * (1/std) + (-mean/std)
    mean32 = jnp.asarray(mean, dtype=jnp.float32).reshape(C)
    std32 = jnp.asarray(std, dtype=jnp.float32).reshape(C)
    scale_c = 1.0 / std32
    bias_c = -mean32 / std32
    # One (scale, bias) per flattened (n, c) row -> lane-broadcast in the kernel.
    scale_rows = jnp.tile(scale_c, (N,)).reshape(R, 1)
    bias_rows = jnp.tile(bias_c, (N,)).reshape(R, 1)

    x2 = x.reshape(R, L)

    # ---- Fixed lane-dense tiles + cdiv grid (boundary masking handles ragged
    # edges; every block dim is a multiple of (8, 128) or the full extent). ----
    LANE_CAP = 4096  # multiple of 128
    lane = L if L <= LANE_CAP else LANE_CAP

    # Dtype-aware sublane unit: 8 (f32), 16 (bf16/f16), 32 (int8/fp8).
    sublane_unit = max(8, 32 // itemsize)
    rows_cap = max(sublane_unit, target_tile_bytes // (lane * itemsize))
    # Clamp rows so the lane-padded (rows, 128) scale/bias double-buffers stay
    # small next to the x/out tiles (<= ~2 MiB total even for f32).
    rows_cap = min(rows_cap, 1024)
    rows = (rows_cap // sublane_unit) * sublane_unit
    if rows >= R:
        rows = R  # full extent is always a legal block dim
    # Prefer >= 2 blocks on the leading "parallel" axis so v7x can shard the
    # memory stream across both TensorCores (only when R is large enough).
    if pl.cdiv(R, rows) == 1 and R > sublane_unit:
        rows = _round_up(pl.cdiv(R, 2), sublane_unit)

    # j innermost: the scale/bias block index is constant across consecutive j
    # steps, so Pallas does not re-DMA the narrow parameter columns.
    grid = (pl.cdiv(R, rows), pl.cdiv(L, lane))

    kwargs = {}
    if in_place:
        # Elementwise op -> write the result into x2's buffer.  Only a true
        # in-place update if the caller donates x (jit donate_argnums);
        # otherwise XLA inserts a defensive copy.
        kwargs["input_output_aliases"] = {2: 0}

    out2 = pl.pallas_call(
        _normalize_kernel,
        out_shape=jax.ShapeDtypeStruct((R, L), dtype),
        grid=grid,
        in_specs=[
            pl.BlockSpec((rows, 1), lambda i, j: (i, 0)),      # scale (f32)
            pl.BlockSpec((rows, 1), lambda i, j: (i, 0)),      # bias  (f32)
            pl.BlockSpec((rows, lane), lambda i, j: (i, j)),   # x
        ],
        out_specs=pl.BlockSpec((rows, lane), lambda i, j: (i, j)),
        compiler_params=pltpu.CompilerParams(
            dimension_semantics=("parallel", "parallel"),
        ),
        **kwargs,
    )(scale_rows, bias_rows, x2)

    return out2.reshape(N, C, H, W)


if __name__ == "__main__":
    key = jax.random.PRNGKey(0)
    N, C, H, W = 2, 4, 16, 16

    x = jax.random.normal(key, (N, C, H, W), dtype=jnp.float32)

    # Deterministic "ImageNet-like" per-channel stats (sized for C=4).
    mean = jnp.array([0.485, 0.456, 0.406, 0.5], dtype=jnp.float32)
    std = jnp.array([0.229, 0.224, 0.225, 0.25], dtype=jnp.float32)

    # Reference (plain JAX, mirrors the PyTorch per-channel loop semantics).
    ref = (x - mean[None, :, None, None]) / std[None, :, None, None]

    out = normalize(x, mean, std)
    out = jax.block_until_ready(out)

    assert out.shape == x.shape
    assert out.dtype == x.dtype
    # scale/bias (FMA) form differs from a true divide by a few f32 ULPs.
    assert jnp.allclose(out, ref, atol=1e-5, rtol=1e-5), "mismatch vs reference"

    print("KERNEL_OK")
</pallas_src>

<mosaic_0001>
module attributes {stable_mosaic.version = 11 : i64} {
  func.func @_normalize_kernel(%arg0: i32, %arg1: i32, %arg2: memref<8x1xf32, #tpu.memory_space<vmem>>, %arg3: memref<8x1xf32, #tpu.memory_space<vmem>>, %arg4: memref<8x256xf32, #tpu.memory_space<vmem>>, %arg5: memref<8x256xf32, #tpu.memory_space<vmem>>) attributes {dimension_semantics = [#tpu.dimension_semantics<parallel>, #tpu.dimension_semantics<parallel>], iteration_bounds = array<i64: 1, 1>, scalar_prefetch = 0 : i64, scratch_operands = 0 : i64, tpu.core_type = #tpu.core_type<tc>, window_params = [{transform_indices = @transform_0, window_bounds = array<i64: 8, 1>}, {transform_indices = @transform_1, window_bounds = array<i64: 8, 1>}, {transform_indices = @transform_2, window_bounds = array<i64: 8, 256>}, {transform_indices = @transform_3, window_bounds = array<i64: 8, 256>}]} {
    %c0 = arith.constant 0 : index
    %c0_0 = arith.constant 0 : index
    %0 = vector.load %arg4[%c0, %c0_0] : memref<8x256xf32, #tpu.memory_space<vmem>>, vector<8x256xf32>
    %c0_1 = arith.constant 0 : index
    %c0_2 = arith.constant 0 : index
    %1 = vector.load %arg2[%c0_1, %c0_2] : memref<8x1xf32, #tpu.memory_space<vmem>>, vector<8x1xf32>
    %2 = vector.broadcast %1 : vector<8x1xf32> to vector<8x256xf32>
    %3 = arith.mulf %0, %2 : vector<8x256xf32>
    %c0_3 = arith.constant 0 : index
    %c0_4 = arith.constant 0 : index
    %4 = vector.load %arg3[%c0_3, %c0_4] : memref<8x1xf32, #tpu.memory_space<vmem>>, vector<8x1xf32>
    %5 = vector.broadcast %4 : vector<8x1xf32> to vector<8x256xf32>
    %6 = arith.addf %3, %5 : vector<8x256xf32>
    %c0_5 = arith.constant 0 : index
    %c0_6 = arith.constant 0 : index
    %7 = vector.load %arg5[%c0_5, %c0_6] : memref<8x256xf32, #tpu.memory_space<vmem>>, vector<8x256xf32>
    tpu.vector_store %arg5[%c0_5, %c0_6], %6 {strides = array<i32>} : memref<8x256xf32, #tpu.memory_space<vmem>>, vector<8x256xf32>,
    return
  }
  func.func @transform_0(%arg0: i32, %arg1: i32) -> (i32, i32) {
    %c0_i32 = arith.constant 0 : i32
    %c0_i32_0 = arith.constant 0 : i32
    return %arg0, %c0_i32 : i32, i32
  }
  func.func @transform_1(%arg0: i32, %arg1: i32) -> (i32, i32) {
    %c0_i32 = arith.constant 0 : i32
    %c0_i32_0 = arith.constant 0 : i32
    return %arg0, %c0_i32 : i32, i32
  }
  func.func @transform_2(%arg0: i32, %arg1: i32) -> (i32, i32) {
    %c0_i32 = arith.constant 0 : i32
    return %arg0, %arg1 : i32, i32
  }
  func.func @transform_3(%arg0: i32, %arg1: i32) -> (i32, i32) {
    %c0_i32 = arith.constant 0 : i32
    return %arg0, %arg1 : i32, i32
  }
}

</mosaic_0001>

<llo_original>
// kernel: tpu_custom_call.1
$region0: #{tpu_custom_call.1}
  #allocation0 [shape = 'u32[]', space=smem, size = 0x4, offset = 0x4, fixed_abs, tag = 'smem constant byte address 0x4 - core index']
  #allocation1 [shape = 'u32[144,128]{1,0:T(1,128)}', space=vmem, size = 0x12000, scoped, tag = 'internal scratch']
  %s0 = inlined_call_operand.vmem [shape: f32[8,1], index: 0, kind: input, shape index: {}]
  %s1 = inlined_call_operand.vmem [shape: f32[8,1], index: 1, kind: input, shape index: {}]
  %s2 = inlined_call_operand.vmem [shape: f32[8,256], index: 2, kind: input, shape index: {}]
  %s3 = inlined_call_operand.hbm [shape: f32[8,256], index: 3, kind: output, shape index: {}]
  %s4 = sld [smem:[#allocation0]]
  $region22: #{tpu_custom_call.1} parent=0
    _
  %s6 = ssub.s32 1, %s4
  %s7 = scalar_select 0, %s6, %s4
  $region1: #{tpu_custom_call.1} parent=0
    #allocation2 [shape = 'u8[8192]{0}', space=vmem, size = 0x2000, scoped, tag = 'output window, operand 0, single buffered']
    #allocation3 [shape = 's32[1]{0}', space=sflag, size = 0x4, scoped, tag = 'scoped memory for tpu_custom_call.1']
    %8 = vsyncpa [#allocation3], 0
    // Predicated region
    $region2: #{tpu_custom_call.1} parent=1 // pred_check
      _
    $region3: #{tpu_custom_call.1} parent=1 // pred_check_branch
      %10 = sbr.rel (0) target = $region5
    $region4: #{tpu_custom_call.1} parent=1 // pred_region
      _
    $region5: #{tpu_custom_call.1} parent=1 // pred_fallthru
      _
    // Predicated region
    $region6: #{tpu_custom_call.1} parent=1 // pred_check
      _
    $region7: #{tpu_custom_call.1} parent=1 // pred_check_branch
      %12 = sbr.rel (0) target = $region9
    $region8: #{tpu_custom_call.1} parent=1 // pred_region
      _
    $region9: #{tpu_custom_call.1} parent=1 // pred_fallthru
      _
    // Predicated region
    $region10: #{tpu_custom_call.1} parent=1 // pred_check
      _
    $region11: #{tpu_custom_call.1} parent=1 // pred_check_branch
      %14 = sbr.rel (0) target = $region13
    $region12: #{tpu_custom_call.1} parent=1 // pred_region
      _
    $region13: #{tpu_custom_call.1} parent=1 // pred_fallthru
      _
    %v15 = vld [vmem:[%s2] sm:$0xff]
    %v16 = vld [vmem:[%s2 + $0x8] sm:$0xff]
    %v17 = vld [vmem:[%s0] sm:$0xff]
    %19 = vset.pattern.permute.xlu0 0
    %20 = vperm.xlu0 %19, %v17
    %v21 = vpop.permute.xlu0 %20
    %v23 = vmul.f32 %v15, %v21
    %v24 = vmul.f32 %v16, %v21
    %v25 = vld [vmem:[%s1] sm:$0xff]
    %27 = vset.pattern.permute.xlu0 0
    %28 = vperm.xlu0 %27, %v25
    %v29 = vpop.permute.xlu0 %28
    %v31 = vadd.f32 %v23, %v29
    %v32 = vadd.f32 %v24, %v29
    %33 = vst [vmem:[#allocation2] sm:$0xff] %v31
    %34 = vst [vmem:[#allocation2 + $0x8] sm:$0xff] %v32
    // Predicated region
    $region14: #{tpu_custom_call.1} parent=1 // pred_check
      _
    $region15: #{tpu_custom_call.1} parent=1 // pred_check_branch
      %36 = sbr.rel (0) target = $region17
    $region16: #{tpu_custom_call.1} parent=1 // pred_region
      %s38 = ssub.s32 256, 256
      %39 = vsyncadd [#allocation3], %s38
      %s41 = sshll.u32 [#allocation2], 4
      %s42 = int_to_ptr.vmem [resolvable:$true] %s41
      %44 = dma.vmem_to_hbm [thread:$0]  %s42, 256, %s3, [#allocation3]
    $region17: #{tpu_custom_call.1} parent=1 // pred_fallthru
      _
    // Predicated region
    $region18: #{tpu_custom_call.1} parent=1 // pred_check
      _
    $region19: #{tpu_custom_call.1} parent=1 // pred_check_branch
      %46 = sbr.rel (0) target = $region21
    $region20: #{tpu_custom_call.1} parent=1 // pred_region
      %47 = dma.done [#allocation3], 256
    $region21: #{tpu_custom_call.1} parent=1 // pred_fallthru
      _
    %48 = vsyncpa [#allocation3], 1

</llo_original>
